<compile_context>
chip_gen: v5e
topology: v5e:2x2
jax: 0.10.0
libtpu: 0.0.40
codegen_flags: <defaults>
</compile_context>

<pallas_src>
import functools

import jax
import jax.numpy as jnp
from jax.experimental import pallas as pl
from jax.experimental.pallas import tpu as pltpu


def _round_up(x, m):
    return ((x + m - 1) // m) * m


def _cdiv(a, b):
    return (a + b - 1) // b


@functools.lru_cache(maxsize=None)
def _vmem_capacity_bytes():
    """Physical VMEM (128 MiB v5e/v6e, 64 MiB v7x); conservative fallback if unknown."""
    try:
        cap = int(pltpu.get_tpu_info().vmem_capacity_bytes)
        if cap > 0:
            return cap
    except Exception:
        pass
    return 64 * 1024 * 1024


def _easynet_kernel(x_ref, w1_ref, b1_ref, w2_ref, b2_ref, w3_ref, b3_ref, o_ref):
    # Layer 1 + ReLU: bf16/f32 MXU matmul, f32 accumulate, f32 bias/ReLU.
    h1 = jnp.dot(x_ref[...], w1_ref[...], preferred_element_type=jnp.float32)
    h1 = jnp.maximum(h1 + b1_ref[...], 0.0)
    # Layer 2 + ReLU (re-cast so bf16 mode keeps the MXU in bf16).
    h2 = jnp.dot(h1.astype(w2_ref.dtype), w2_ref[...],
                 preferred_element_type=jnp.float32)
    h2 = jnp.maximum(h2 + b2_ref[...], 0.0)
    # Layer 3 (no activation).
    out = jnp.dot(h2.astype(w3_ref.dtype), w3_ref[...],
                  preferred_element_type=jnp.float32)
    o_ref[...] = (out + b3_ref[...]).astype(o_ref.dtype)


@functools.partial(
    jax.jit,
    static_argnames=("tb", "Bp", "Dp", "Op", "compute_dtype", "vmem_limit"))
def _easynet_forward_impl(x, w1, b1, w2, b2, w3, b3, *, tb, Bp, Dp, Op,
                          compute_dtype, vmem_limit):
    B, D = x.shape
    H = w1.shape[1]
    O = w3.shape[1]

    # Zero-pad: batch only to the sublane minimum (Bp), features to 128-lane
    # multiples.  Zero rows of w1 / zero columns of w3,b3 keep the math identical;
    # padded rows/columns are sliced off below.
    xp = x
    if (Bp, Dp) != (B, D):
        xp = jnp.zeros((Bp, Dp), x.dtype).at[:B, :D].set(x)
    w1p = w1 if Dp == D else jnp.zeros((Dp, H), w1.dtype).at[:D, :].set(w1)
    w3p = w3 if Op == O else jnp.zeros((H, Op), w3.dtype).at[:, :O].set(w3)
    b3p = b3 if Op == O else jnp.zeros((1, Op), b3.dtype).at[:, :O].set(b3)

    # Matmul operands in compute_dtype (bf16 by default); biases stay f32.
    xp = xp.astype(compute_dtype)
    w1p = w1p.astype(compute_dtype)
    w2c = w2.astype(compute_dtype)
    w3p = w3p.astype(compute_dtype)
    b1c = b1.astype(jnp.float32)
    b2c = b2.astype(jnp.float32)
    b3p = b3p.astype(jnp.float32)

    grid = (_cdiv(Bp, tb),)   # final batch tile may be ragged; the pipeline masks it.

    def _resident(shape):
        # Constant index_map -> fetched once; single-buffer to halve weight VMEM.
        return pl.BlockSpec(shape, lambda i: (0, 0), pipeline_mode=pl.Buffered(1))

    wbytes = jnp.dtype(compute_dtype).itemsize
    cost = pl.CostEstimate(
        flops=2 * Bp * (Dp * H + H * H + H * Op),
        transcendentals=0,
        bytes_accessed=(Bp * Dp * wbytes + Bp * Op * wbytes
                        + (Dp * H + H * H + H * Op) * wbytes
                        + (2 * H + Op) * 4),
    )

    out = pl.pallas_call(
        _easynet_kernel,
        out_shape=jax.ShapeDtypeStruct((Bp, Op), compute_dtype),
        grid_spec=pltpu.PrefetchScalarGridSpec(
            num_scalar_prefetch=0,
            grid=grid,
            in_specs=[
                pl.BlockSpec((tb, Dp), lambda i: (i, 0)),   # x tile (double-buffered)
                _resident((Dp, H)),                          # w1 (resident)
                _resident((1, H)),                           # b1
                _resident((H, H)),                           # w2 (resident)
                _resident((1, H)),                           # b2
                _resident((H, Op)),                          # w3 (resident)
                _resident((1, Op)),                          # b3
            ],
            out_specs=pl.BlockSpec((tb, Op), lambda i: (i, 0)),  # lane-dense output
        ),
        compiler_params=pltpu.CompilerParams(
            dimension_semantics=("parallel",),
            vmem_limit_bytes=vmem_limit,
        ),
        cost_estimate=cost,
    )(xp, w1p, b1c, w2c, b2c, w3p, b3p)

    return out[:B, :O].astype(x.dtype)


def easynet_forward(x, params, *, batch_tile=None, compute_dtype=jnp.bfloat16):
    """Fused EasyNet forward.

    x: (B, input_dim) float32.
    params: (w1 (D,H), b1 (1,H), w2 (H,H), b2 (1,H), w3 (H,19), b3 (1,19)); weights are
            stored (in_features, out_features) so y = x @ W + b (== torch x @ W.T).
    compute_dtype: matmul operand dtype (bf16 default = MXU-native on v5e/v6e/v7x);
                   accumulation, bias add and ReLU are always f32.  Pass jnp.float32
                   for an exact f32 mode.
    """
    w1, b1, w2, b2, w3, b3 = params
    B, D = x.shape
    H = w1.shape[1]
    O = w3.shape[1]
    assert H % 128 == 0, "hidden (= 128 * size_scaler) must be a multiple of 128"

    wbytes = jnp.dtype(compute_dtype).itemsize
    min_rows = 8 if wbytes >= 4 else (16 if wbytes == 2 else 32)

    # Lane-dense padded feature dims (multiples of 128); batch padded only to the
    # sublane minimum (not to a full tile).
    Dp = _round_up(D, 128)
    Op = _round_up(O, 128)
    Bp = _round_up(B, min_rows)

    vmem_cap = _vmem_capacity_bytes()
    vmem_budget = int(0.9 * vmem_cap)

    # Resident (single-buffered) weights + f32 biases.
    weight_bytes = (Dp * H + H * H + H * Op) * wbytes + (2 * H + Op) * 4
    if weight_bytes > int(0.8 * vmem_cap):
        # TODO(synk): K-tile w2 over a reduction grid axis (f32 VMEM accumulator,
        # init/finalize via pl.when, axis marked "arbitrary") so very large
        # size_scaler (e.g. H >= 4096 on v7x) works instead of failing here.
        raise NotImplementedError(
            f"resident weights ({weight_bytes / 2**20:.1f} MiB) exceed the VMEM budget "
            f"({vmem_cap / 2**20:.0f} MiB); layer-2 K-tiling not implemented.")

    # Generation-aware default batch tile: 512 rows against 128 MiB VMEM (v5e/v6e),
    # 256 against 64 MiB (v7x).
    if batch_tile is None:
        batch_tile = 512 if vmem_cap >= 96 * 1024 * 1024 else 256

    tb = min(_round_up(max(batch_tile, min_rows), min_rows), Bp)

    # >= 2 grid steps whenever the batch allows: v7x has 2 TensorCores and "parallel"
    # grid axes shard across them; extra steps are near-free on single-core chips.
    if _cdiv(Bp, tb) < 2 and Bp >= 2 * min_rows:
        tb = _round_up(_cdiv(Bp, 2), min_rows)

    def _fits(t):
        io = 2 * t * Dp * wbytes + 2 * t * Op * wbytes      # double-buffered x / out tiles
        inter = 2 * t * H * 4 + t * max(H, Op) * 4          # fused f32 h1/h2 + headroom
        return weight_bytes + io + inter <= vmem_budget

    while tb > min_rows and not _fits(tb):
        tb = max(min_rows, _round_up(tb // 2, min_rows))

    est = (weight_bytes
           + 2 * tb * Dp * wbytes + 2 * tb * Op * wbytes
           + 2 * tb * H * 4 + tb * max(H, Op) * 4)
    vmem_limit = int(min(vmem_budget, max(est + (4 << 20), 32 << 20)))

    return _easynet_forward_impl(
        x, w1, b1, w2, b2, w3, b3,
        tb=int(tb), Bp=int(Bp), Dp=int(Dp), Op=int(Op),
        compute_dtype=compute_dtype, vmem_limit=vmem_limit)


def init_easynet_params(key, size_scaler, input_dim):
    """nn.Linear-style init: U(-1/sqrt(fan_in), 1/sqrt(fan_in)); weights (in, out)."""
    hidden = 128 * size_scaler
    out_dim = 19
    k1, k2, k3, k4, k5, k6 = jax.random.split(key, 6)

    def lin(kw, kb, fan_in, fan_out):
        bound = 1.0 / jnp.sqrt(jnp.float32(fan_in))
        w = jax.random.uniform(kw, (fan_in, fan_out), jnp.float32, -bound, bound)
        b = jax.random.uniform(kb, (1, fan_out), jnp.float32, -bound, bound)
        return w, b

    w1, b1 = lin(k1, k2, input_dim, hidden)
    w2, b2 = lin(k3, k4, hidden, hidden)
    w3, b3 = lin(k5, k6, hidden, out_dim)
    return (w1, b1, w2, b2, w3, b3)


def easynet_reference(x, params):
    w1, b1, w2, b2, w3, b3 = params
    h1 = jnp.maximum(x @ w1 + b1, 0.0)
    h2 = jnp.maximum(h1 @ w2 + b2, 0.0)
    return h2 @ w3 + b3


if __name__ == "__main__":
    size_scaler = 1        # hidden = 128
    input_dim = 32

    key = jax.random.PRNGKey(0)
    kx, kp = jax.random.split(key)
    params = init_easynet_params(kp, size_scaler, input_dim)

    # Case 1: small DQN-inference batch, default bf16 matmul path (f32 accumulation).
    x8 = jax.random.normal(kx, (8, input_dim), jnp.float32)
    ref8 = easynet_reference(x8, params)
    out8 = jax.block_until_ready(easynet_forward(x8, params))
    assert out8.shape == (8, 19)
    assert out8.dtype == x8.dtype
    assert jnp.allclose(out8, ref8, atol=1e-1, rtol=1e-1), "bf16 mismatch vs reference"

    # Case 2: opt-in exact f32 compute path.
    out8_f32 = jax.block_until_ready(
        easynet_forward(x8, params, compute_dtype=jnp.float32))
    assert out8_f32.shape == (8, 19)
    assert jnp.allclose(out8_f32, ref8, atol=1e-4, rtol=1e-4), "f32 mismatch vs reference"

    # Case 3: ragged batch + multi-step grid (exercises the masked final batch tile
    # and the >=2-step megacore split).
    x40 = jax.random.normal(kx, (40, input_dim), jnp.float32)
    ref40 = easynet_reference(x40, params)
    out40 = jax.block_until_ready(easynet_forward(x40, params, batch_tile=32))
    assert out40.shape == (40, 19)
    assert jnp.allclose(out40, ref40, atol=1e-1, rtol=1e-1), "ragged-batch mismatch"

    print("KERNEL_OK")
</pallas_src>

<mosaic_0001>
module attributes {stable_mosaic.version = 11 : i64} {
  func.func @_easynet_kernel(%arg0: i32, %arg1: memref<16x128xbf16, #tpu.memory_space<vmem>>, %arg2: memref<128x128xbf16, #tpu.memory_space<vmem>>, %arg3: memref<1x128xf32, #tpu.memory_space<vmem>>, %arg4: memref<128x128xbf16, #tpu.memory_space<vmem>>, %arg5: memref<1x128xf32, #tpu.memory_space<vmem>>, %arg6: memref<128x128xbf16, #tpu.memory_space<vmem>>, %arg7: memref<1x128xf32, #tpu.memory_space<vmem>>, %arg8: memref<16x128xbf16, #tpu.memory_space<vmem>>) attributes {dimension_semantics = [#tpu.dimension_semantics<parallel>], iteration_bounds = array<i64: 1>, scalar_prefetch = 0 : i64, scratch_operands = 0 : i64, tpu.core_type = #tpu.core_type<tc>, window_params = [{transform_indices = @transform_0, window_bounds = array<i64: 16, 128>}, {pipeline_mode = #tpu.pipeline_mode<synchronous>, transform_indices = @transform_1, window_bounds = array<i64: 128, 128>}, {pipeline_mode = #tpu.pipeline_mode<synchronous>, transform_indices = @transform_2, window_bounds = array<i64: 1, 128>}, {pipeline_mode = #tpu.pipeline_mode<synchronous>, transform_indices = @transform_3, window_bounds = array<i64: 128, 128>}, {pipeline_mode = #tpu.pipeline_mode<synchronous>, transform_indices = @transform_4, window_bounds = array<i64: 1, 128>}, {pipeline_mode = #tpu.pipeline_mode<synchronous>, transform_indices = @transform_5, window_bounds = array<i64: 128, 128>}, {pipeline_mode = #tpu.pipeline_mode<synchronous>, transform_indices = @transform_6, window_bounds = array<i64: 1, 128>}, {transform_indices = @transform_7, window_bounds = array<i64: 16, 128>}]} {
    %c0 = arith.constant 0 : index
    %c0_0 = arith.constant 0 : index
    %0 = vector.load %arg1[%c0, %c0_0] : memref<16x128xbf16, #tpu.memory_space<vmem>>, vector<16x128xbf16>
    %c0_1 = arith.constant 0 : index
    %c0_2 = arith.constant 0 : index
    %1 = vector.load %arg2[%c0_1, %c0_2] : memref<128x128xbf16, #tpu.memory_space<vmem>>, vector<128x128xbf16>
    %cst = arith.constant dense<0.000000e+00> : vector<16x128xf32>
    %2 = tpu.matmul %0, %1, %cst {dimension_numbers = #tpu.dot_dimension_numbers<[1], [0], [0], [1], [0, 0, 1, 1], [], []>} : vector<16x128xbf16>, vector<128x128xbf16>, vector<16x128xf32> -> vector<16x128xf32>
    %c0_3 = arith.constant 0 : index
    %c0_4 = arith.constant 0 : index
    %3 = vector.load %arg3[%c0_3, %c0_4] : memref<1x128xf32, #tpu.memory_space<vmem>>, vector<1x128xf32>
    %4 = vector.broadcast %3 : vector<1x128xf32> to vector<16x128xf32>
    %5 = arith.addf %2, %4 : vector<16x128xf32>
    %cst_5 = arith.constant 0.000000e+00 : f32
    %6 = vector.broadcast %cst_5 : f32 to vector<16x128xf32>
    %7 = arith.maximumf %5, %6 : vector<16x128xf32>
    %8 = arith.truncf %7 : vector<16x128xf32> to vector<16x128xbf16>
    %c0_6 = arith.constant 0 : index
    %c0_7 = arith.constant 0 : index
    %9 = vector.load %arg4[%c0_6, %c0_7] : memref<128x128xbf16, #tpu.memory_space<vmem>>, vector<128x128xbf16>
    %cst_8 = arith.constant dense<0.000000e+00> : vector<16x128xf32>
    %10 = tpu.matmul %8, %9, %cst_8 {dimension_numbers = #tpu.dot_dimension_numbers<[1], [0], [0], [1], [0, 0, 1, 1], [], []>} : vector<16x128xbf16>, vector<128x128xbf16>, vector<16x128xf32> -> vector<16x128xf32>
    %c0_9 = arith.constant 0 : index
    %c0_10 = arith.constant 0 : index
    %11 = vector.load %arg5[%c0_9, %c0_10] : memref<1x128xf32, #tpu.memory_space<vmem>>, vector<1x128xf32>
    %12 = vector.broadcast %11 : vector<1x128xf32> to vector<16x128xf32>
    %13 = arith.addf %10, %12 : vector<16x128xf32>
    %cst_11 = arith.constant 0.000000e+00 : f32
    %14 = vector.broadcast %cst_11 : f32 to vector<16x128xf32>
    %15 = arith.maximumf %13, %14 : vector<16x128xf32>
    %16 = arith.truncf %15 : vector<16x128xf32> to vector<16x128xbf16>
    %c0_12 = arith.constant 0 : index
    %c0_13 = arith.constant 0 : index
    %17 = vector.load %arg6[%c0_12, %c0_13] : memref<128x128xbf16, #tpu.memory_space<vmem>>, vector<128x128xbf16>
    %cst_14 = arith.constant dense<0.000000e+00> : vector<16x128xf32>
    %18 = tpu.matmul %16, %17, %cst_14 {dimension_numbers = #tpu.dot_dimension_numbers<[1], [0], [0], [1], [0, 0, 1, 1], [], []>} : vector<16x128xbf16>, vector<128x128xbf16>, vector<16x128xf32> -> vector<16x128xf32>
    %c0_15 = arith.constant 0 : index
    %c0_16 = arith.constant 0 : index
    %19 = vector.load %arg7[%c0_15, %c0_16] : memref<1x128xf32, #tpu.memory_space<vmem>>, vector<1x128xf32>
    %20 = vector.broadcast %19 : vector<1x128xf32> to vector<16x128xf32>
    %21 = arith.addf %18, %20 : vector<16x128xf32>
    %22 = arith.truncf %21 : vector<16x128xf32> to vector<16x128xbf16>
    %c0_17 = arith.constant 0 : index
    %c0_18 = arith.constant 0 : index
    %23 = vector.load %arg8[%c0_17, %c0_18] : memref<16x128xbf16, #tpu.memory_space<vmem>>, vector<16x128xbf16>
    tpu.vector_store %arg8[%c0_17, %c0_18], %22 {strides = array<i32>} : memref<16x128xbf16, #tpu.memory_space<vmem>>, vector<16x128xbf16>,
    return
  }
  func.func @transform_0(%arg0: i32) -> (i32, i32) {
    %c0_i32 = arith.constant 0 : i32
    %c0_i32_0 = arith.constant 0 : i32
    return %arg0, %c0_i32 : i32, i32
  }
  func.func @transform_1(%arg0: i32) -> (i32, i32) {
    %c0_i32 = arith.constant 0 : i32
    %c0_i32_0 = arith.constant 0 : i32
    %c0_i32_1 = arith.constant 0 : i32
    return %c0_i32, %c0_i32_0 : i32, i32
  }
  func.func @transform_2(%arg0: i32) -> (i32, i32) {
    %c0_i32 = arith.constant 0 : i32
    %c0_i32_0 = arith.constant 0 : i32
    %c0_i32_1 = arith.constant 0 : i32
    return %c0_i32, %c0_i32_0 : i32, i32
  }
  func.func @transform_3(%arg0: i32) -> (i32, i32) {
    %c0_i32 = arith.constant 0 : i32
    %c0_i32_0 = arith.constant 0 : i32
    %c0_i32_1 = arith.constant 0 : i32
    return %c0_i32, %c0_i32_0 : i32, i32
  }
  func.func @transform_4(%arg0: i32) -> (i32, i32) {
    %c0_i32 = arith.constant 0 : i32
    %c0_i32_0 = arith.constant 0 : i32
    %c0_i32_1 = arith.constant 0 : i32
    return %c0_i32, %c0_i32_0 : i32, i32
  }
  func.func @transform_5(%arg0: i32) -> (i32, i32) {
    %c0_i32 = arith.constant 0 : i32
    %c0_i32_0 = arith.constant 0 : i32
    %c0_i32_1 = arith.constant 0 : i32
    return %c0_i32, %c0_i32_0 : i32, i32
  }
  func.func @transform_6(%arg0: i32) -> (i32, i32) {
    %c0_i32 = arith.constant 0 : i32
    %c0_i32_0 = arith.constant 0 : i32
    %c0_i32_1 = arith.constant 0 : i32
    return %c0_i32, %c0_i32_0 : i32, i32
  }
  func.func @transform_7(%arg0: i32) -> (i32, i32) {
    %c0_i32 = arith.constant 0 : i32
    %c0_i32_0 = arith.constant 0 : i32
    return %arg0, %c0_i32 : i32, i32
  }
}

</mosaic_0001>

<llo_original>
// kernel: _easynet_forward_impl.1
$region0: #{_easynet_forward_impl.1}
  #allocation0 [shape = 'u32[]', space=smem, size = 0x4, offset = 0x4, fixed_abs, tag = 'smem constant byte address 0x4 - core index']
  #allocation1 [shape = 'u32[72,128]{1,0:T(1,128)}', space=vmem, size = 0x9000, scoped, tag = 'internal scratch']
  %s0 = inlined_call_operand.vmem [shape: bf16[16,128], index: 0, kind: input, shape index: {}]
  %s1 = inlined_call_operand.vmem [shape: bf16[128,128], index: 1, kind: input, shape index: {}]
  %s2 = inlined_call_operand.vmem [shape: f32[1,128], index: 2, kind: input, shape index: {}]
  %s3 = inlined_call_operand.vmem [shape: bf16[128,128], index: 3, kind: input, shape index: {}]
  %s4 = inlined_call_operand.vmem [shape: f32[1,128], index: 4, kind: input, shape index: {}]
  %s5 = inlined_call_operand.vmem [shape: bf16[128,128], index: 5, kind: input, shape index: {}]
  %s6 = inlined_call_operand.vmem [shape: f32[1,128], index: 6, kind: input, shape index: {}]
  %s7 = inlined_call_operand.vmem [shape: bf16[16,128], index: 7, kind: output, shape index: {}]
  %s8 = sld [smem:[#allocation0]]
  $region38: #{_easynet_forward_impl.1} parent=0
    _
  %s10 = ssub.s32 1, %s8
  %s11 = scalar_select 0, %s10, %s8
  // Predicated region
  $region2: #{_easynet_forward_impl.1} parent=0 // pred_check
    _
  $region3: #{_easynet_forward_impl.1} parent=0 // pred_check_branch
    %13 = sbr.rel (0) target = $region5
  $region4: #{_easynet_forward_impl.1} parent=0 // pred_region
    _
  $region5: #{_easynet_forward_impl.1} parent=0 // pred_fallthru
    _
  // Predicated region
  $region6: #{_easynet_forward_impl.1} parent=0 // pred_check
    _
  $region7: #{_easynet_forward_impl.1} parent=0 // pred_check_branch
    %15 = sbr.rel (0) target = $region9
  $region8: #{_easynet_forward_impl.1} parent=0 // pred_region
    _
  $region9: #{_easynet_forward_impl.1} parent=0 // pred_fallthru
    _
  // Predicated region
  $region10: #{_easynet_forward_impl.1} parent=0 // pred_check
    _
  $region11: #{_easynet_forward_impl.1} parent=0 // pred_check_branch
    %17 = sbr.rel (0) target = $region13
  $region12: #{_easynet_forward_impl.1} parent=0 // pred_region
    _
  $region13: #{_easynet_forward_impl.1} parent=0 // pred_fallthru
    _
  // Predicated region
  $region14: #{_easynet_forward_impl.1} parent=0 // pred_check
    _
  $region15: #{_easynet_forward_impl.1} parent=0 // pred_check_branch
    %19 = sbr.rel (0) target = $region17
  $region16: #{_easynet_forward_impl.1} parent=0 // pred_region
    _
  $region17: #{_easynet_forward_impl.1} parent=0 // pred_fallthru
    _
  // Predicated region
  $region18: #{_easynet_forward_impl.1} parent=0 // pred_check
    _
  $region19: #{_easynet_forward_impl.1} parent=0 // pred_check_branch
    %21 = sbr.rel (0) target = $region21
  $region20: #{_easynet_forward_impl.1} parent=0 // pred_region
    _
  $region21: #{_easynet_forward_impl.1} parent=0 // pred_fallthru
    _
  // Predicated region
  $region22: #{_easynet_forward_impl.1} parent=0 // pred_check
    _
  $region23: #{_easynet_forward_impl.1} parent=0 // pred_check_branch
    %23 = sbr.rel (0) target = $region25
  $region24: #{_easynet_forward_impl.1} parent=0 // pred_region
    _
  $region25: #{_easynet_forward_impl.1} parent=0 // pred_fallthru
    _
  // Predicated region
  $region26: #{_easynet_forward_impl.1} parent=0 // pred_check
    _
  $region27: #{_easynet_forward_impl.1} parent=0 // pred_check_branch
    %25 = sbr.rel (0) target = $region29
  $region28: #{_easynet_forward_impl.1} parent=0 // pred_region
    _
  $region29: #{_easynet_forward_impl.1} parent=0 // pred_fallthru
    _
  %v26 = vld [vmem:[%s0] sm:$0xf]
  %v27 = vld [vmem:[%s0 + $0x4] sm:$0xf]
  %v28 = vld [vmem:[%s1] sm:$0xf]
  %v29 = vld [vmem:[%s1 + $0x4] sm:$0xf]
  %v30 = vld [vmem:[%s1 + $0x8] sm:$0xf]
  %v31 = vld [vmem:[%s1 + $0xc] sm:$0xf]
  %v32 = vld [vmem:[%s1 + $0x10] sm:$0xf]
  %v33 = vld [vmem:[%s1 + $0x14] sm:$0xf]
  %v34 = vld [vmem:[%s1 + $0x18] sm:$0xf]
  %v35 = vld [vmem:[%s1 + $0x1c] sm:$0xf]
  %v36 = vld [vmem:[%s1 + $0x20] sm:$0xf]
  %v37 = vld [vmem:[%s1 + $0x24] sm:$0xf]
  %v38 = vld [vmem:[%s1 + $0x28] sm:$0xf]
  %v39 = vld [vmem:[%s1 + $0x2c] sm:$0xf]
  %v40 = vld [vmem:[%s1 + $0x30] sm:$0xf]
  %v41 = vld [vmem:[%s1 + $0x34] sm:$0xf]
  %v42 = vld [vmem:[%s1 + $0x38] sm:$0xf]
  %v43 = vld [vmem:[%s1 + $0x3c] sm:$0xf]
  %v44 = vld [vmem:[%s2] sm:$0x1]
  %v46 = vperm.slane %v44, 0
  %v50 = vunpack.c.l.b16 %v26
  %v51 = vunpack.c.l.b16 %v27
  %v52 = vpack.c.b16 %v51, %v50
  %v70 = vunpack.c.l.b16 %v28
  %v71 = vunpack.c.l.b16 %v29
  %v72 = vunpack.c.l.b16 %v30
  %v73 = vunpack.c.l.b16 %v31
  %v74 = vunpack.c.l.b16 %v32
  %v75 = vunpack.c.l.b16 %v33
  %v76 = vunpack.c.l.b16 %v34
  %v77 = vunpack.c.l.b16 %v35
  %v78 = vunpack.c.l.b16 %v36
  %v79 = vunpack.c.l.b16 %v37
  %v80 = vunpack.c.l.b16 %v38
  %v81 = vunpack.c.l.b16 %v39
  %v82 = vunpack.c.l.b16 %v40
  %v83 = vunpack.c.l.b16 %v41
  %v84 = vunpack.c.l.b16 %v42
  %v85 = vunpack.c.l.b16 %v43
  %v86 = vpack.c.b16 %v71, %v70
  %v87 = vpack.c.b16 %v73, %v72
  %v88 = vpack.c.b16 %v75, %v74
  %v89 = vpack.c.b16 %v77, %v76
  %v90 = vpack.c.b16 %v79, %v78
  %v91 = vpack.c.b16 %v81, %v80
  %v92 = vpack.c.b16 %v83, %v82
  %v93 = vpack.c.b16 %v85, %v84
  %102 = vmatpush.bf16.msra.mxu0 %v93
  %103 = vmatpush.bf16.msra.mxu0 %v92
  %104 = vmatpush.bf16.msra.mxu0 %v91
  %105 = vmatpush.bf16.msra.mxu0 %v90
  %106 = vmatpush.bf16.msra.mxu0 %v89
  %107 = vmatpush.bf16.msra.mxu0 %v88
  %108 = vmatpush.bf16.msra.mxu0 %v87
  %109 = vmatpush.bf16.msra.mxu0 %v86
  %110 = vmatmul.bf16.gmra.mxu0 %v52
  %v111 = vpop.f32.mrf.mxu0
  %v112 = vadd.f32 %v46, %v111
  %v113 = vpop.f32.mrf.mxu0
  %v114 = vadd.f32 %v46, %v113
  %115 = vdwg.mxu0
  %v116 = vmax.f32 %v112, 0.0
  %v117 = vmax.f32 %v114, 0.0
  %v118 = vpack.c.bf16 %v117, %v116
  %v119 = vld [vmem:[%s3] sm:$0xf]
  %v120 = vld [vmem:[%s3 + $0x4] sm:$0xf]
  %v121 = vld [vmem:[%s3 + $0x8] sm:$0xf]
  %v122 = vld [vmem:[%s3 + $0xc] sm:$0xf]
  %v123 = vld [vmem:[%s3 + $0x10] sm:$0xf]
  %v124 = vld [vmem:[%s3 + $0x14] sm:$0xf]
  %v125 = vld [vmem:[%s3 + $0x18] sm:$0xf]
  %v126 = vld [vmem:[%s3 + $0x1c] sm:$0xf]
  %v127 = vld [vmem:[%s3 + $0x20] sm:$0xf]
  %v128 = vld [vmem:[%s3 + $0x24] sm:$0xf]
  %v129 = vld [vmem:[%s3 + $0x28] sm:$0xf]
  %v130 = vld [vmem:[%s3 + $0x2c] sm:$0xf]
  %v131 = vld [vmem:[%s3 + $0x30] sm:$0xf]
  %v132 = vld [vmem:[%s3 + $0x34] sm:$0xf]
  %v133 = vld [vmem:[%s3 + $0x38] sm:$0xf]
  %v134 = vld [vmem:[%s3 + $0x3c] sm:$0xf]
  %v135 = vld [vmem:[%s4] sm:$0x1]
  %v137 = vperm.slane %v135, 0
  %v155 = vunpack.c.l.b16 %v119
  %v156 = vunpack.c.l.b16 %v120
  %v157 = vunpack.c.l.b16 %v121
  %v158 = vunpack.c.l.b16 %v122
  %v159 = vunpack.c.l.b16 %v123
  %v160 = vunpack.c.l.b16 %v124
  %v161 = vunpack.c.l.b16 %v125
  %v162 = vunpack.c.l.b16 %v126
  %v163 = vunpack.c.l.b16 %v127
  %v164 = vunpack.c.l.b16 %v128
  %v165 = vunpack.c.l.b16 %v129
  %v166 = vunpack.c.l.b16 %v130
  %v167 = vunpack.c.l.b16 %v131
  %v168 = vunpack.c.l.b16 %v132
  %v169 = vunpack.c.l.b16 %v133
  %v170 = vunpack.c.l.b16 %v134
  %v171 = vpack.c.b16 %v156, %v155
  %v172 = vpack.c.b16 %v158, %v157
  %v173 = vpack.c.b16 %v160, %v159
  %v174 = vpack.c.b16 %v162, %v161
  %v175 = vpack.c.b16 %v164, %v163
  %v176 = vpack.c.b16 %v166, %v165
  %v177 = vpack.c.b16 %v168, %v167
  %v178 = vpack.c.b16 %v170, %v169
  %187 = vmatpush.bf16.msra.mxu0 %v178
  %188 = vmatpush.bf16.msra.mxu0 %v177
  %189 = vmatpush.bf16.msra.mxu0 %v176
  %190 = vmatpush.bf16.msra.mxu0 %v175
  %191 = vmatpush.bf16.msra.mxu0 %v174
  %192 = vmatpush.bf16.msra.mxu0 %v173
  %193 = vmatpush.bf16.msra.mxu0 %v172
  %194 = vmatpush.bf16.msra.mxu0 %v171
  %195 = vmatmul.bf16.gmra.mxu0 %v118
  %v196 = vpop.f32.mrf.mxu0
  %v197 = vadd.f32 %v137, %v196
  %v198 = vpop.f32.mrf.mxu0
  %v199 = vadd.f32 %v137, %v198
  %200 = vdwg.mxu0
  %v201 = vmax.f32 %v197, 0.0
  %v202 = vmax.f32 %v199, 0.0
  %v203 = vpack.c.bf16 %v202, %v201
  %v204 = vld [vmem:[%s5] sm:$0xf]
  %v205 = vld [vmem:[%s5 + $0x4] sm:$0xf]
  %v206 = vld [vmem:[%s5 + $0x8] sm:$0xf]
  %v207 = vld [vmem:[%s5 + $0xc] sm:$0xf]
  %v208 = vld [vmem:[%s5 + $0x10] sm:$0xf]
  %v209 = vld [vmem:[%s5 + $0x14] sm:$0xf]
  %v210 = vld [vmem:[%s5 + $0x18] sm:$0xf]
  %v211 = vld [vmem:[%s5 + $0x1c] sm:$0xf]
  %v212 = vld [vmem:[%s5 + $0x20] sm:$0xf]
  %v213 = vld [vmem:[%s5 + $0x24] sm:$0xf]
  %v214 = vld [vmem:[%s5 + $0x28] sm:$0xf]
  %v215 = vld [vmem:[%s5 + $0x2c] sm:$0xf]
  %v216 = vld [vmem:[%s5 + $0x30] sm:$0xf]
  %v217 = vld [vmem:[%s5 + $0x34] sm:$0xf]
  %v218 = vld [vmem:[%s5 + $0x38] sm:$0xf]
  %v219 = vld [vmem:[%s5 + $0x3c] sm:$0xf]
  %v220 = vld [vmem:[%s6] sm:$0x1]
  %v222 = vperm.slane %v220, 0
  %v240 = vunpack.c.l.b16 %v204
  %v241 = vunpack.c.l.b16 %v205
  %v242 = vunpack.c.l.b16 %v206
  %v243 = vunpack.c.l.b16 %v207
  %v244 = vunpack.c.l.b16 %v208
  %v245 = vunpack.c.l.b16 %v209
  %v246 = vunpack.c.l.b16 %v210
  %v247 = vunpack.c.l.b16 %v211
  %v248 = vunpack.c.l.b16 %v212
  %v249 = vunpack.c.l.b16 %v213
  %v250 = vunpack.c.l.b16 %v214
  %v251 = vunpack.c.l.b16 %v215
  %v252 = vunpack.c.l.b16 %v216
  %v253 = vunpack.c.l.b16 %v217
  %v254 = vunpack.c.l.b16 %v218
  %v255 = vunpack.c.l.b16 %v219
  %v256 = vpack.c.b16 %v241, %v240
  %v257 = vpack.c.b16 %v243, %v242
  %v258 = vpack.c.b16 %v245, %v244
  %v259 = vpack.c.b16 %v247, %v246
  %v260 = vpack.c.b16 %v249, %v248
  %v261 = vpack.c.b16 %v251, %v250
  %v262 = vpack.c.b16 %v253, %v252
  %v263 = vpack.c.b16 %v255, %v254
  %272 = vmatpush.bf16.msra.mxu0 %v263
  %273 = vmatpush.bf16.msra.mxu0 %v262
  %274 = vmatpush.bf16.msra.mxu0 %v261
  %275 = vmatpush.bf16.msra.mxu0 %v260
  %276 = vmatpush.bf16.msra.mxu0 %v259
  %277 = vmatpush.bf16.msra.mxu0 %v258
  %278 = vmatpush.bf16.msra.mxu0 %v257
  %279 = vmatpush.bf16.msra.mxu0 %v256
  %280 = vmatmul.bf16.gmra.mxu0 %v203
  %v281 = vpop.f32.mrf.mxu0
  %v282 = vadd.f32 %v222, %v281
  %v283 = vpop.f32.mrf.mxu0
  %v284 = vadd.f32 %v222, %v283
  %285 = vdwg.mxu0
  %v286 = vpack.c.bf16 %v282, %v282
  %v287 = vpack.c.bf16 %v284, %v284
  %288 = vst [vmem:[%s7] sm:$0xf] %v286
  %289 = vst [vmem:[%s7 + $0x4] sm:$0xf] %v287
  // Predicated region
  $region30: #{_easynet_forward_impl.1} parent=0 // pred_check
    _
  $region31: #{_easynet_forward_impl.1} parent=0 // pred_check_branch
    %291 = sbr.rel (0) target = $region33
  $region32: #{_easynet_forward_impl.1} parent=0 // pred_region
    _
  $region33: #{_easynet_forward_impl.1} parent=0 // pred_fallthru
    _
  // Predicated region
  $region34: #{_easynet_forward_impl.1} parent=0 // pred_check
    _
  $region35: #{_easynet_forward_impl.1} parent=0 // pred_check_branch
    %293 = sbr.rel (0) target = $region37
  $region36: #{_easynet_forward_impl.1} parent=0 // pred_region
    _
  $region37: #{_easynet_forward_impl.1} parent=0 // pred_fallthru
    _

</llo_original>
